<compile_context>
chip_gen: v5e
topology: v5e:2x2
jax: 0.10.0
libtpu: 0.0.40
codegen_flags: <defaults>
</compile_context>

<pallas_src>
import functools

import jax
import jax.numpy as jnp
from jax.experimental import pallas as pl
from jax.experimental.pallas import tpu as pltpu


def _double_conv_kernel(x_ref, w1_ref, b1_ref, w2_ref, b2_ref, o_ref, *, H, W):
    # x_ref : (1, Cin,  H*W)   channel-major, flattened spatial (lane-dense)
    # w1_ref: (9, Cout, Cin)   tap-major, tap = (dh+1)*3 + (dw+1)
    # b1_ref: (Cout, 1)        f32
    # w2_ref: (9, Cout, Cout)
    # b2_ref: (Cout, 1)
    # o_ref : (1, Cout, H*W)
    L = H * W
    LPAD = ((W + 1 + 127) // 128) * 128  # lane-aligned left zero strip, >= W+1
    RPAD = W + 1                         # right zero strip covers dh=+1 bottom-row taps

    # Column-validity masks (horizontal wrap only; vertical out-of-image taps read the
    # zero strips directly).  Shared by both convs; applied to (Cout, L) partial sums.
    col = jax.lax.broadcasted_iota(jnp.int32, (1, L), 1) % W
    m_left = (col >= 1).astype(jnp.float32)        # valid output columns for dw == -1
    m_right = (col <= W - 2).astype(jnp.float32)   # valid output columns for dw == +1

    def conv3x3_bias_relu(inp, w_ref, b_ref):
        # inp: (Ci, L) f32, channel-major flattened spatial.
        ci = inp.shape[0]
        cdt = w_ref.dtype                              # compute dtype (bf16)
        inp_c = inp.astype(cdt)                        # cast BEFORE pad build (half traffic)
        xp = jnp.concatenate(
            [jnp.zeros((ci, LPAD), cdt), inp_c, jnp.zeros((ci, RPAD), cdt)],
            axis=1)                                    # (Ci, LPAD + L + RPAD), lane-aligned

        def dw_partial(dw):
            # Sum of the three dh taps for this horizontal offset; f32 accumulation.
            acc = None
            for dh in (-1, 0, 1):
                tap = (dh + 1) * 3 + (dw + 1)
                s = dh * W + dw
                part = jnp.dot(w_ref[tap],                       # (Cout, Ci) bf16
                               xp[:, LPAD + s:LPAD + s + L],     # (Ci, L)   bf16, static slice
                               preferred_element_type=jnp.float32)
                acc = part if acc is None else acc + part
            return acc                                           # (Cout, L) f32

        y = dw_partial(0) + dw_partial(-1) * m_left + dw_partial(1) * m_right
        y = y + b_ref[...]                                       # (Cout, 1) f32 broadcast
        return jnp.maximum(y, 0.0)

    x = x_ref[0].astype(jnp.float32)                   # (Cin, L)
    h = conv3x3_bias_relu(x, w1_ref, b1_ref)           # stays in VMEM/vregs
    # Dropout2d(p=0.0) / eval mode == identity.
    y = conv3x3_bias_relu(h, w2_ref, b2_ref)           # (Cout, L)
    o_ref[0] = y.astype(o_ref.dtype)


def _vmem_limit_bytes(Cin, Cout, L):
    """Rough per-grid-step VMEM estimate (double-buffered I/O + in-kernel temps) + headroom."""
    f32, bf16 = 4, 2
    lp = L + 2 * 256                                   # padded-row upper bound
    io = 2 * (Cin * L * f32 + Cout * L * f32)          # double-buffered input/output blocks
    wts = 2 * 9 * (Cin * Cout + Cout * Cout) * bf16 + 4 * Cout * f32
    tmp = (Cin + Cout) * lp * bf16 + 6 * Cout * L * f32 + (Cin + Cout) * L * f32
    est = 4 * (io + wts + tmp)                         # generous margin for compiler temps
    return int(min(max(est, 16 << 20), 96 << 20))


def double_conv_forward(x_nchw, packed_params, dropout_p=0.0):
    """Forward pass of DoubleConv. Input NCHW (PyTorch convention), output NCHW."""
    # TODO(synk): implement training-mode Dropout2d (p>0); identity only for p == 0.
    assert dropout_p == 0.0, "dropout_p > 0 (training-mode Dropout2d) is not implemented"
    w1_p, b1_p, w2_p, b2_p = packed_params             # (9,Cout,Cin),(Cout,1),(9,Cout,Cout),(Cout,1)
    N, Cin, H, W = x_nchw.shape
    Cout = w1_p.shape[1]
    L = H * W
    assert w1_p.shape == (9, Cout, Cin) and w2_p.shape == (9, Cout, Cout)

    # Free reshape (contiguous minor dims) — no HBM transpose pass.
    x_flat = x_nchw.reshape(N, Cin, L)

    kernel = functools.partial(_double_conv_kernel, H=H, W=W)

    out_flat = pl.pallas_call(
        kernel,
        out_shape=jax.ShapeDtypeStruct((N, Cout, L), x_nchw.dtype),
        grid_spec=pltpu.PrefetchScalarGridSpec(
            num_scalar_prefetch=0,
            grid=(N,),
            in_specs=[
                pl.BlockSpec((1, Cin, L), lambda n: (n, 0, 0)),
                pl.BlockSpec((9, Cout, Cin), lambda n: (0, 0, 0)),   # constant: not re-DMA'd
                pl.BlockSpec((Cout, 1), lambda n: (0, 0)),
                pl.BlockSpec((9, Cout, Cout), lambda n: (0, 0, 0)),
                pl.BlockSpec((Cout, 1), lambda n: (0, 0)),
            ],
            out_specs=pl.BlockSpec((1, Cout, L), lambda n: (n, 0, 0)),
        ),
        compiler_params=pltpu.CompilerParams(
            dimension_semantics=("parallel",),
            vmem_limit_bytes=_vmem_limit_bytes(Cin, Cout, L),
        ),
    )(x_flat, w1_p, b1_p, w2_p, b2_p)

    return out_flat.reshape(N, Cout, H, W)


def init_params(key, in_channels, out_channels, dtype=jnp.float32):
    """Deterministic parameter init. Weights stored as (kh, kw, Cin, Cout) HWIO."""
    k1, k2, k3, k4 = jax.random.split(key, 4)
    fan_in1 = in_channels * 9
    fan_in2 = out_channels * 9
    w1 = jax.random.normal(k1, (3, 3, in_channels, out_channels), dtype) * (fan_in1 ** -0.5)
    b1 = jax.random.normal(k2, (out_channels,), dtype) * 0.01
    w2 = jax.random.normal(k3, (3, 3, out_channels, out_channels), dtype) * (fan_in2 ** -0.5)
    b2 = jax.random.normal(k4, (out_channels,), dtype) * 0.01
    return (w1, b1, w2, b2)


def pack_params(params, compute_dtype=jnp.bfloat16):
    """One-time weight repack for the kernel: (kh,kw,Ci,Cout) -> (9, Cout, Ci) tap-major,
    cast to the MXU compute dtype (bf16 by default; f32 accumulation in-kernel)."""
    w1, b1, w2, b2 = params
    Cin, Cout = w1.shape[2], w1.shape[3]
    w1_p = jnp.transpose(w1, (0, 1, 3, 2)).reshape(9, Cout, Cin).astype(compute_dtype)
    w2_p = jnp.transpose(w2, (0, 1, 3, 2)).reshape(9, Cout, Cout).astype(compute_dtype)
    b1_p = b1.reshape(Cout, 1).astype(jnp.float32)
    b2_p = b2.reshape(Cout, 1).astype(jnp.float32)
    return (w1_p, b1_p, w2_p, b2_p)


def _reference_forward(x_nchw, params):
    """Pure-JAX f32 reference using lax.conv_general_dilated (NCHW, OIHW like PyTorch)."""
    w1, b1, w2, b2 = params
    w1_oihw = jnp.transpose(w1, (3, 2, 0, 1))
    w2_oihw = jnp.transpose(w2, (3, 2, 0, 1))

    def conv(x, w, b):
        y = jax.lax.conv_general_dilated(
            x, w, window_strides=(1, 1), padding=((1, 1), (1, 1)),
            dimension_numbers=("NCHW", "OIHW", "NCHW"),
        )
        return jnp.maximum(y + b[None, :, None, None], 0.0)

    return conv(conv(x_nchw, w1_oihw, b1), w2_oihw, b2)


if __name__ == "__main__":
    key = jax.random.PRNGKey(0)
    k_x, k_p = jax.random.split(key)

    N, Cin, Cout, H, W = 2, 4, 8, 16, 16
    x = jax.random.normal(k_x, (N, Cin, H, W), jnp.float32)
    params = init_params(k_p, Cin, Cout)
    packed = pack_params(params)                 # one-time repack (bf16 MXU operands)

    out = double_conv_forward(x, packed, dropout_p=0.0)
    out = jax.block_until_ready(out)

    ref = _reference_forward(x, params)
    assert out.shape == (N, Cout, H, W), out.shape
    # bf16 operands / f32 accumulation vs f32 reference -> loosened tolerance.
    max_err = float(jnp.max(jnp.abs(out - ref)))
    assert jnp.allclose(out, ref, atol=3e-2, rtol=3e-2), f"mismatch vs reference, max_err={max_err}"

    print("KERNEL_OK")
</pallas_src>

<mosaic_0001>
module attributes {stable_mosaic.version = 11 : i64} {
  func.func @_double_conv_kernel(%arg0: i32, %arg1: memref<1x4x256xf32, #tpu.memory_space<vmem>>, %arg2: memref<9x8x4xbf16, #tpu.memory_space<vmem>>, %arg3: memref<8x1xf32, #tpu.memory_space<vmem>>, %arg4: memref<9x8x8xbf16, #tpu.memory_space<vmem>>, %arg5: memref<8x1xf32, #tpu.memory_space<vmem>>, %arg6: memref<1x8x256xf32, #tpu.memory_space<vmem>>) attributes {dimension_semantics = [#tpu.dimension_semantics<parallel>], iteration_bounds = array<i64: 2>, scalar_prefetch = 0 : i64, scratch_operands = 0 : i64, tpu.core_type = #tpu.core_type<tc>, window_params = [{transform_indices = @transform_0, window_bounds = array<i64: 1, 4, 256>}, {pipeline_mode = #tpu.pipeline_mode<synchronous>, transform_indices = @transform_1, window_bounds = array<i64: 9, 8, 4>}, {pipeline_mode = #tpu.pipeline_mode<synchronous>, transform_indices = @transform_2, window_bounds = array<i64: 8, 1>}, {pipeline_mode = #tpu.pipeline_mode<synchronous>, transform_indices = @transform_3, window_bounds = array<i64: 9, 8, 8>}, {pipeline_mode = #tpu.pipeline_mode<synchronous>, transform_indices = @transform_4, window_bounds = array<i64: 8, 1>}, {transform_indices = @transform_5, window_bounds = array<i64: 1, 8, 256>}]} {
    %0 = tpu.iota {dimensions = array<i32: 1>} : vector<1x256xi32>
    %c16_i32 = arith.constant 16 : i32
    %c0_i32 = arith.constant 0 : i32
    %1 = arith.cmpi eq, %c16_i32, %c0_i32 : i32
    %c1_i32 = arith.constant 1 : i32
    %2 = arith.select %1, %c1_i32, %c16_i32 : i32
    %3 = vector.broadcast %2 : i32 to vector<1x256xi32>
    %4 = arith.remsi %0, %3 : vector<1x256xi32>
    %c0_i32_0 = arith.constant 0 : i32
    %5 = vector.broadcast %c0_i32_0 : i32 to vector<1x256xi32>
    %6 = arith.cmpi ne, %4, %5 : vector<1x256xi32>
    %c0_i32_1 = arith.constant 0 : i32
    %7 = vector.broadcast %c0_i32_1 : i32 to vector<1x256xi32>
    %8 = arith.cmpi slt, %4, %7 : vector<1x256xi32>
    %c0_i32_2 = arith.constant 0 : i32
    %9 = arith.cmpi slt, %2, %c0_i32_2 : i32
    %10 = vector.broadcast %9 : i1 to vector<1x256xi1>
    %11 = vector.broadcast %10 : vector<1x256xi1> to vector<1x256xi1>
    %12 = arith.xori %8, %11 : vector<1x256xi1>
    %13 = arith.andi %12, %6 : vector<1x256xi1>
    %14 = vector.broadcast %2 : i32 to vector<1x256xi32>
    %15 = arith.addi %4, %14 : vector<1x256xi32>
    %16 = arith.select %13, %15, %4 : vector<1x256xi1>, vector<1x256xi32>
    %c1_i32_3 = arith.constant 1 : i32
    %17 = vector.broadcast %c1_i32_3 : i32 to vector<1x256xi32>
    %18 = arith.cmpi sge, %16, %17 : vector<1x256xi32>
    %19 = arith.extui %18 : vector<1x256xi1> to vector<1x256xi32>
    %20 = arith.sitofp %19 : vector<1x256xi32> to vector<1x256xf32>
    %c14_i32 = arith.constant 14 : i32
    %21 = vector.broadcast %c14_i32 : i32 to vector<1x256xi32>
    %22 = arith.cmpi sle, %16, %21 : vector<1x256xi32>
    %23 = arith.extui %22 : vector<1x256xi1> to vector<1x256xi32>
    %24 = arith.sitofp %23 : vector<1x256xi32> to vector<1x256xf32>
    %c0 = arith.constant 0 : index
    %c0_4 = arith.constant 0 : index
    %c0_5 = arith.constant 0 : index
    %25 = vector.load %arg1[%c0, %c0_4, %c0_5] : memref<1x4x256xf32, #tpu.memory_space<vmem>>, vector<1x4x256xf32>
    %26 = vector.shape_cast %25 : vector<1x4x256xf32> to vector<4x256xf32>
    %27 = arith.truncf %26 : vector<4x256xf32> to vector<4x256xbf16>
    %cst = arith.constant 0.000000e+00 : bf16
    %28 = vector.broadcast %cst : bf16 to vector<4x128xbf16>
    %cst_6 = arith.constant 0.000000e+00 : bf16
    %29 = vector.broadcast %cst_6 : bf16 to vector<4x17xbf16>
    %30 = tpu.concatenate %28, %27, %29 in 1 : vector<4x128xbf16>, vector<4x256xbf16>, vector<4x17xbf16> -> vector<4x401xbf16>
    %c1 = arith.constant 1 : index
    %c0_7 = arith.constant 0 : index
    %c0_8 = arith.constant 0 : index
    %31 = vector.load %arg2[%c1, %c0_7, %c0_8] : memref<9x8x4xbf16, #tpu.memory_space<vmem>>, vector<1x8x4xbf16>
    %32 = vector.shape_cast %31 : vector<1x8x4xbf16> to vector<8x4xbf16>
    %33 = vector.extract_strided_slice %30 {offsets = [0, 112], sizes = [4, 256], strides = [1, 1]} : vector<4x401xbf16> to vector<4x256xbf16>
    %cst_9 = arith.constant dense<0.000000e+00> : vector<8x256xf32>
    %34 = tpu.matmul %32, %33, %cst_9 {dimension_numbers = #tpu.dot_dimension_numbers<[1], [0], [0], [1], [0, 0, 1, 1], [], []>} : vector<8x4xbf16>, vector<4x256xbf16>, vector<8x256xf32> -> vector<8x256xf32>
    %c4 = arith.constant 4 : index
    %c0_10 = arith.constant 0 : index
    %c0_11 = arith.constant 0 : index
    %35 = vector.load %arg2[%c4, %c0_10, %c0_11] : memref<9x8x4xbf16, #tpu.memory_space<vmem>>, vector<1x8x4xbf16>
    %36 = vector.shape_cast %35 : vector<1x8x4xbf16> to vector<8x4xbf16>
    %37 = vector.extract_strided_slice %30 {offsets = [0, 128], sizes = [4, 256], strides = [1, 1]} : vector<4x401xbf16> to vector<4x256xbf16>
    %cst_12 = arith.constant dense<0.000000e+00> : vector<8x256xf32>
    %38 = tpu.matmul %36, %37, %cst_12 {dimension_numbers = #tpu.dot_dimension_numbers<[1], [0], [0], [1], [0, 0, 1, 1], [], []>} : vector<8x4xbf16>, vector<4x256xbf16>, vector<8x256xf32> -> vector<8x256xf32>
    %39 = arith.addf %34, %38 : vector<8x256xf32>
    %c7 = arith.constant 7 : index
    %c0_13 = arith.constant 0 : index
    %c0_14 = arith.constant 0 : index
    %40 = vector.load %arg2[%c7, %c0_13, %c0_14] : memref<9x8x4xbf16, #tpu.memory_space<vmem>>, vector<1x8x4xbf16>
    %41 = vector.shape_cast %40 : vector<1x8x4xbf16> to vector<8x4xbf16>
    %42 = vector.extract_strided_slice %30 {offsets = [0, 144], sizes = [4, 256], strides = [1, 1]} : vector<4x401xbf16> to vector<4x256xbf16>
    %cst_15 = arith.constant dense<0.000000e+00> : vector<8x256xf32>
    %43 = tpu.matmul %41, %42, %cst_15 {dimension_numbers = #tpu.dot_dimension_numbers<[1], [0], [0], [1], [0, 0, 1, 1], [], []>} : vector<8x4xbf16>, vector<4x256xbf16>, vector<8x256xf32> -> vector<8x256xf32>
    %44 = arith.addf %39, %43 : vector<8x256xf32>
    %c0_16 = arith.constant 0 : index
    %c0_17 = arith.constant 0 : index
    %c0_18 = arith.constant 0 : index
    %45 = vector.load %arg2[%c0_16, %c0_17, %c0_18] : memref<9x8x4xbf16, #tpu.memory_space<vmem>>, vector<1x8x4xbf16>
    %46 = vector.shape_cast %45 : vector<1x8x4xbf16> to vector<8x4xbf16>
    %47 = vector.extract_strided_slice %30 {offsets = [0, 111], sizes = [4, 256], strides = [1, 1]} : vector<4x401xbf16> to vector<4x256xbf16>
    %cst_19 = arith.constant dense<0.000000e+00> : vector<8x256xf32>
    %48 = tpu.matmul %46, %47, %cst_19 {dimension_numbers = #tpu.dot_dimension_numbers<[1], [0], [0], [1], [0, 0, 1, 1], [], []>} : vector<8x4xbf16>, vector<4x256xbf16>, vector<8x256xf32> -> vector<8x256xf32>
    %c3 = arith.constant 3 : index
    %c0_20 = arith.constant 0 : index
    %c0_21 = arith.constant 0 : index
    %49 = vector.load %arg2[%c3, %c0_20, %c0_21] : memref<9x8x4xbf16, #tpu.memory_space<vmem>>, vector<1x8x4xbf16>
    %50 = vector.shape_cast %49 : vector<1x8x4xbf16> to vector<8x4xbf16>
    %51 = vector.extract_strided_slice %30 {offsets = [0, 127], sizes = [4, 256], strides = [1, 1]} : vector<4x401xbf16> to vector<4x256xbf16>
    %cst_22 = arith.constant dense<0.000000e+00> : vector<8x256xf32>
    %52 = tpu.matmul %50, %51, %cst_22 {dimension_numbers = #tpu.dot_dimension_numbers<[1], [0], [0], [1], [0, 0, 1, 1], [], []>} : vector<8x4xbf16>, vector<4x256xbf16>, vector<8x256xf32> -> vector<8x256xf32>
    %53 = arith.addf %48, %52 : vector<8x256xf32>
    %c6 = arith.constant 6 : index
    %c0_23 = arith.constant 0 : index
    %c0_24 = arith.constant 0 : index
    %54 = vector.load %arg2[%c6, %c0_23, %c0_24] : memref<9x8x4xbf16, #tpu.memory_space<vmem>>, vector<1x8x4xbf16>
    %55 = vector.shape_cast %54 : vector<1x8x4xbf16> to vector<8x4xbf16>
    %56 = vector.extract_strided_slice %30 {offsets = [0, 143], sizes = [4, 256], strides = [1, 1]} : vector<4x401xbf16> to vector<4x256xbf16>
    %cst_25 = arith.constant dense<0.000000e+00> : vector<8x256xf32>
    %57 = tpu.matmul %55, %56, %cst_25 {dimension_numbers = #tpu.dot_dimension_numbers<[1], [0], [0], [1], [0, 0, 1, 1], [], []>} : vector<8x4xbf16>, vector<4x256xbf16>, vector<8x256xf32> -> vector<8x256xf32>
    %58 = arith.addf %53, %57 : vector<8x256xf32>
    %59 = vector.broadcast %20 : vector<1x256xf32> to vector<8x256xf32>
    %60 = arith.mulf %58, %59 : vector<8x256xf32>
    %61 = arith.addf %44, %60 : vector<8x256xf32>
    %c2 = arith.constant 2 : index
    %c0_26 = arith.constant 0 : index
    %c0_27 = arith.constant 0 : index
    %62 = vector.load %arg2[%c2, %c0_26, %c0_27] : memref<9x8x4xbf16, #tpu.memory_space<vmem>>, vector<1x8x4xbf16>
    %63 = vector.shape_cast %62 : vector<1x8x4xbf16> to vector<8x4xbf16>
    %64 = vector.extract_strided_slice %30 {offsets = [0, 113], sizes = [4, 256], strides = [1, 1]} : vector<4x401xbf16> to vector<4x256xbf16>
    %cst_28 = arith.constant dense<0.000000e+00> : vector<8x256xf32>
    %65 = tpu.matmul %63, %64, %cst_28 {dimension_numbers = #tpu.dot_dimension_numbers<[1], [0], [0], [1], [0, 0, 1, 1], [], []>} : vector<8x4xbf16>, vector<4x256xbf16>, vector<8x256xf32> -> vector<8x256xf32>
    %c5 = arith.constant 5 : index
    %c0_29 = arith.constant 0 : index
    %c0_30 = arith.constant 0 : index
    %66 = vector.load %arg2[%c5, %c0_29, %c0_30] : memref<9x8x4xbf16, #tpu.memory_space<vmem>>, vector<1x8x4xbf16>
    %67 = vector.shape_cast %66 : vector<1x8x4xbf16> to vector<8x4xbf16>
    %68 = vector.extract_strided_slice %30 {offsets = [0, 129], sizes = [4, 256], strides = [1, 1]} : vector<4x401xbf16> to vector<4x256xbf16>
    %cst_31 = arith.constant dense<0.000000e+00> : vector<8x256xf32>
    %69 = tpu.matmul %67, %68, %cst_31 {dimension_numbers = #tpu.dot_dimension_numbers<[1], [0], [0], [1], [0, 0, 1, 1], [], []>} : vector<8x4xbf16>, vector<4x256xbf16>, vector<8x256xf32> -> vector<8x256xf32>
    %70 = arith.addf %65, %69 : vector<8x256xf32>
    %c8 = arith.constant 8 : index
    %c0_32 = arith.constant 0 : index
    %c0_33 = arith.constant 0 : index
    %71 = vector.load %arg2[%c8, %c0_32, %c0_33] : memref<9x8x4xbf16, #tpu.memory_space<vmem>>, vector<1x8x4xbf16>
    %72 = vector.shape_cast %71 : vector<1x8x4xbf16> to vector<8x4xbf16>
    %73 = vector.extract_strided_slice %30 {offsets = [0, 145], sizes = [4, 256], strides = [1, 1]} : vector<4x401xbf16> to vector<4x256xbf16>
    %cst_34 = arith.constant dense<0.000000e+00> : vector<8x256xf32>
    %74 = tpu.matmul %72, %73, %cst_34 {dimension_numbers = #tpu.dot_dimension_numbers<[1], [0], [0], [1], [0, 0, 1, 1], [], []>} : vector<8x4xbf16>, vector<4x256xbf16>, vector<8x256xf32> -> vector<8x256xf32>
    %75 = arith.addf %70, %74 : vector<8x256xf32>
    %76 = vector.broadcast %24 : vector<1x256xf32> to vector<8x256xf32>
    %77 = arith.mulf %75, %76 : vector<8x256xf32>
    %78 = arith.addf %61, %77 : vector<8x256xf32>
    %c0_35 = arith.constant 0 : index
    %c0_36 = arith.constant 0 : index
    %79 = vector.load %arg3[%c0_35, %c0_36] : memref<8x1xf32, #tpu.memory_space<vmem>>, vector<8x1xf32>
    %80 = vector.broadcast %79 : vector<8x1xf32> to vector<8x256xf32>
    %81 = arith.addf %78, %80 : vector<8x256xf32>
    %cst_37 = arith.constant 0.000000e+00 : f32
    %82 = vector.broadcast %cst_37 : f32 to vector<8x256xf32>
    %83 = arith.maximumf %81, %82 : vector<8x256xf32>
    %84 = arith.truncf %83 : vector<8x256xf32> to vector<8x256xbf16>
    %cst_38 = arith.constant 0.000000e+00 : bf16
    %85 = vector.broadcast %cst_38 : bf16 to vector<8x128xbf16>
    %cst_39 = arith.constant 0.000000e+00 : bf16
    %86 = vector.broadcast %cst_39 : bf16 to vector<8x17xbf16>
    %87 = tpu.concatenate %85, %84, %86 in 1 : vector<8x128xbf16>, vector<8x256xbf16>, vector<8x17xbf16> -> vector<8x401xbf16>
    %c1_40 = arith.constant 1 : index
    %c0_41 = arith.constant 0 : index
    %c0_42 = arith.constant 0 : index
    %88 = vector.load %arg4[%c1_40, %c0_41, %c0_42] : memref<9x8x8xbf16, #tpu.memory_space<vmem>>, vector<1x8x8xbf16>
    %89 = vector.shape_cast %88 : vector<1x8x8xbf16> to vector<8x8xbf16>
    %90 = vector.extract_strided_slice %87 {offsets = [0, 112], sizes = [8, 256], strides = [1, 1]} : vector<8x401xbf16> to vector<8x256xbf16>
    %cst_43 = arith.constant dense<0.000000e+00> : vector<8x256xf32>
    %91 = tpu.matmul %89, %90, %cst_43 {dimension_numbers = #tpu.dot_dimension_numbers<[1], [0], [0], [1], [0, 0, 1, 1], [], []>} : vector<8x8xbf16>, vector<8x256xbf16>, vector<8x256xf32> -> vector<8x256xf32>
    %c4_44 = arith.constant 4 : index
    %c0_45 = arith.constant 0 : index
    %c0_46 = arith.constant 0 : index
    %92 = vector.load %arg4[%c4_44, %c0_45, %c0_46] : memref<9x8x8xbf16, #tpu.memory_space<vmem>>, vector<1x8x8xbf16>
    %93 = vector.shape_cast %92 : vector<1x8x8xbf16> to vector<8x8xbf16>
    %94 = vector.extract_strided_slice %87 {offsets = [0, 128], sizes = [8, 256], strides = [1, 1]} : vector<8x401xbf16> to vector<8x256xbf16>
    %cst_47 = arith.constant dense<0.000000e+00> : vector<8x256xf32>
    %95 = tpu.matmul %93, %94, %cst_47 {dimension_numbers = #tpu.dot_dimension_numbers<[1], [0], [0], [1], [0, 0, 1, 1], [], []>} : vector<8x8xbf16>, vector<8x256xbf16>, vector<8x256xf32> -> vector<8x256xf32>
    %96 = arith.addf %91, %95 : vector<8x256xf32>
    %c7_48 = arith.constant 7 : index
    %c0_49 = arith.constant 0 : index
    %c0_50 = arith.constant 0 : index
    %97 = vector.load %arg4[%c7_48, %c0_49, %c0_50] : memref<9x8x8xbf16, #tpu.memory_space<vmem>>, vector<1x8x8xbf16>
    %98 = vector.shape_cast %97 : vector<1x8x8xbf16> to vector<8x8xbf16>
    %99 = vector.extract_strided_slice %87 {offsets = [0, 144], sizes = [8, 256], strides = [1, 1]} : vector<8x401xbf16> to vector<8x256xbf16>
    %cst_51 = arith.constant dense<0.000000e+00> : vector<8x256xf32>
    %100 = tpu.matmul %98, %99, %cst_51 {dimension_numbers = #tpu.dot_dimension_numbers<[1], [0], [0], [1], [0, 0, 1, 1], [], []>} : vector<8x8xbf16>, vector<8x256xbf16>, vector<8x256xf32> -> vector<8x256xf32>
    %101 = arith.addf %96, %100 : vector<8x256xf32>
    %c0_52 = arith.constant 0 : index
    %c0_53 = arith.constant 0 : index
    %c0_54 = arith.constant 0 : index
    %102 = vector.load %arg4[%c0_52, %c0_53, %c0_54] : memref<9x8x8xbf16, #tpu.memory_space<vmem>>, vector<1x8x8xbf16>
    %103 = vector.shape_cast %102 : vector<1x8x8xbf16> to vector<8x8xbf16>
    %104 = vector.extract_strided_slice %87 {offsets = [0, 111], sizes = [8, 256], strides = [1, 1]} : vector<8x401xbf16> to vector<8x256xbf16>
    %cst_55 = arith.constant dense<0.000000e+00> : vector<8x256xf32>
    %105 = tpu.matmul %103, %104, %cst_55 {dimension_numbers = #tpu.dot_dimension_numbers<[1], [0], [0], [1], [0, 0, 1, 1], [], []>} : vector<8x8xbf16>, vector<8x256xbf16>, vector<8x256xf32> -> vector<8x256xf32>
    %c3_56 = arith.constant 3 : index
    %c0_57 = arith.constant 0 : index
    %c0_58 = arith.constant 0 : index
    %106 = vector.load %arg4[%c3_56, %c0_57, %c0_58] : memref<9x8x8xbf16, #tpu.memory_space<vmem>>, vector<1x8x8xbf16>
    %107 = vector.shape_cast %106 : vector<1x8x8xbf16> to vector<8x8xbf16>
    %108 = vector.extract_strided_slice %87 {offsets = [0, 127], sizes = [8, 256], strides = [1, 1]} : vector<8x401xbf16> to vector<8x256xbf16>
    %cst_59 = arith.constant dense<0.000000e+00> : vector<8x256xf32>
    %109 = tpu.matmul %107, %108, %cst_59 {dimension_numbers = #tpu.dot_dimension_numbers<[1], [0], [0], [1], [0, 0, 1, 1], [], []>} : vector<8x8xbf16>, vector<8x256xbf16>, vector<8x256xf32> -> vector<8x256xf32>
    %110 = arith.addf %105, %109 : vector<8x256xf32>
    %c6_60 = arith.constant 6 : index
    %c0_61 = arith.constant 0 : index
    %c0_62 = arith.constant 0 : index
    %111 = vector.load %arg4[%c6_60, %c0_61, %c0_62] : memref<9x8x8xbf16, #tpu.memory_space<vmem>>, vector<1x8x8xbf16>
    %112 = vector.shape_cast %111 : vector<1x8x8xbf16> to vector<8x8xbf16>
    %113 = vector.extract_strided_slice %87 {offsets = [0, 143], sizes = [8, 256], strides = [1, 1]} : vector<8x401xbf16> to vector<8x256xbf16>
    %cst_63 = arith.constant dense<0.000000e+00> : vector<8x256xf32>
    %114 = tpu.matmul %112, %113, %cst_63 {dimension_numbers = #tpu.dot_dimension_numbers<[1], [0], [0], [1], [0, 0, 1, 1], [], []>} : vector<8x8xbf16>, vector<8x256xbf16>, vector<8x256xf32> -> vector<8x256xf32>
    %115 = arith.addf %110, %114 : vector<8x256xf32>
    %116 = vector.broadcast %20 : vector<1x256xf32> to vector<8x256xf32>
    %117 = arith.mulf %115, %116 : vector<8x256xf32>
    %118 = arith.addf %101, %117 : vector<8x256xf32>
    %c2_64 = arith.constant 2 : index
    %c0_65 = arith.constant 0 : index
    %c0_66 = arith.constant 0 : index
    %119 = vector.load %arg4[%c2_64, %c0_65, %c0_66] : memref<9x8x8xbf16, #tpu.memory_space<vmem>>, vector<1x8x8xbf16>
    %120 = vector.shape_cast %119 : vector<1x8x8xbf16> to vector<8x8xbf16>
    %121 = vector.extract_strided_slice %87 {offsets = [0, 113], sizes = [8, 256], strides = [1, 1]} : vector<8x401xbf16> to vector<8x256xbf16>
    %cst_67 = arith.constant dense<0.000000e+00> : vector<8x256xf32>
    %122 = tpu.matmul %120, %121, %cst_67 {dimension_numbers = #tpu.dot_dimension_numbers<[1], [0], [0], [1], [0, 0, 1, 1], [], []>} : vector<8x8xbf16>, vector<8x256xbf16>, vector<8x256xf32> -> vector<8x256xf32>
    %c5_68 = arith.constant 5 : index
    %c0_69 = arith.constant 0 : index
    %c0_70 = arith.constant 0 : index
    %123 = vector.load %arg4[%c5_68, %c0_69, %c0_70] : memref<9x8x8xbf16, #tpu.memory_space<vmem>>, vector<1x8x8xbf16>
    %124 = vector.shape_cast %123 : vector<1x8x8xbf16> to vector<8x8xbf16>
    %125 = vector.extract_strided_slice %87 {offsets = [0, 129], sizes = [8, 256], strides = [1, 1]} : vector<8x401xbf16> to vector<8x256xbf16>
    %cst_71 = arith.constant dense<0.000000e+00> : vector<8x256xf32>
    %126 = tpu.matmul %124, %125, %cst_71 {dimension_numbers = #tpu.dot_dimension_numbers<[1], [0], [0], [1], [0, 0, 1, 1], [], []>} : vector<8x8xbf16>, vector<8x256xbf16>, vector<8x256xf32> -> vector<8x256xf32>
    %127 = arith.addf %122, %126 : vector<8x256xf32>
    %c8_72 = arith.constant 8 : index
    %c0_73 = arith.constant 0 : index
    %c0_74 = arith.constant 0 : index
    %128 = vector.load %arg4[%c8_72, %c0_73, %c0_74] : memref<9x8x8xbf16, #tpu.memory_space<vmem>>, vector<1x8x8xbf16>
    %129 = vector.shape_cast %128 : vector<1x8x8xbf16> to vector<8x8xbf16>
    %130 = vector.extract_strided_slice %87 {offsets = [0, 145], sizes = [8, 256], strides = [1, 1]} : vector<8x401xbf16> to vector<8x256xbf16>
    %cst_75 = arith.constant dense<0.000000e+00> : vector<8x256xf32>
    %131 = tpu.matmul %129, %130, %cst_75 {dimension_numbers = #tpu.dot_dimension_numbers<[1], [0], [0], [1], [0, 0, 1, 1], [], []>} : vector<8x8xbf16>, vector<8x256xbf16>, vector<8x256xf32> -> vector<8x256xf32>
    %132 = arith.addf %127, %131 : vector<8x256xf32>
    %133 = vector.broadcast %24 : vector<1x256xf32> to vector<8x256xf32>
    %134 = arith.mulf %132, %133 : vector<8x256xf32>
    %135 = arith.addf %118, %134 : vector<8x256xf32>
    %c0_76 = arith.constant 0 : index
    %c0_77 = arith.constant 0 : index
    %136 = vector.load %arg5[%c0_76, %c0_77] : memref<8x1xf32, #tpu.memory_space<vmem>>, vector<8x1xf32>
    %137 = vector.broadcast %136 : vector<8x1xf32> to vector<8x256xf32>
    %138 = arith.addf %135, %137 : vector<8x256xf32>
    %cst_78 = arith.constant 0.000000e+00 : f32
    %139 = vector.broadcast %cst_78 : f32 to vector<8x256xf32>
    %140 = arith.maximumf %138, %139 : vector<8x256xf32>
    %c0_79 = arith.constant 0 : index
    %c0_80 = arith.constant 0 : index
    %c0_81 = arith.constant 0 : index
    %141 = vector.load %arg6[%c0_79, %c0_80, %c0_81] : memref<1x8x256xf32, #tpu.memory_space<vmem>>, vector<1x8x256xf32>
    %142 = vector.shape_cast %141 : vector<1x8x256xf32> to vector<8x256xf32>
    %143 = vector.shape_cast %140 : vector<8x256xf32> to vector<1x8x256xf32>
    tpu.vector_store %arg6[%c0_79, %c0_80, %c0_81], %143 {strides = array<i32>} : memref<1x8x256xf32, #tpu.memory_space<vmem>>, vector<1x8x256xf32>,
    return
  }
  func.func @transform_0(%arg0: i32) -> (i32, i32, i32) {
    %c0_i32 = arith.constant 0 : i32
    %c0_i32_0 = arith.constant 0 : i32
    %c0_i32_1 = arith.constant 0 : i32
    return %arg0, %c0_i32, %c0_i32_0 : i32, i32, i32
  }
  func.func @transform_1(%arg0: i32) -> (i32, i32, i32) {
    %c0_i32 = arith.constant 0 : i32
    %c0_i32_0 = arith.constant 0 : i32
    %c0_i32_1 = arith.constant 0 : i32
    %c0_i32_2 = arith.constant 0 : i32
    return %c0_i32, %c0_i32_0, %c0_i32_1 : i32, i32, i32
  }
  func.func @transform_2(%arg0: i32) -> (i32, i32) {
    %c0_i32 = arith.constant 0 : i32
    %c0_i32_0 = arith.constant 0 : i32
    %c0_i32_1 = arith.constant 0 : i32
    return %c0_i32, %c0_i32_0 : i32, i32
  }
  func.func @transform_3(%arg0: i32) -> (i32, i32, i32) {
    %c0_i32 = arith.constant 0 : i32
    %c0_i32_0 = arith.constant 0 : i32
    %c0_i32_1 = arith.constant 0 : i32
    %c0_i32_2 = arith.constant 0 : i32
    return %c0_i32, %c0_i32_0, %c0_i32_1 : i32, i32, i32
  }
  func.func @transform_4(%arg0: i32) -> (i32, i32) {
    %c0_i32 = arith.constant 0 : i32
    %c0_i32_0 = arith.constant 0 : i32
    %c0_i32_1 = arith.constant 0 : i32
    return %c0_i32, %c0_i32_0 : i32, i32
  }
  func.func @transform_5(%arg0: i32) -> (i32, i32, i32) {
    %c0_i32 = arith.constant 0 : i32
    %c0_i32_0 = arith.constant 0 : i32
    %c0_i32_1 = arith.constant 0 : i32
    return %arg0, %c0_i32, %c0_i32_0 : i32, i32, i32
  }
}

</mosaic_0001>

<llo_original>
// kernel: tpu_custom_call.1
$region0: #{tpu_custom_call.1}
  #allocation0 [shape = 'u32[]', space=smem, size = 0x4, offset = 0x4, fixed_abs, tag = 'smem constant byte address 0x4 - core index']
  #allocation1 [shape = 'u32[72,128]{1,0:T(1,128)}', space=vmem, size = 0x9000, scoped, tag = 'internal scratch']
  %s0 = inlined_call_operand.vmem [shape: f32[2,4,256], index: 0, kind: input, shape index: {}]
  %s1 = inlined_call_operand.vmem [shape: bf16[9,8,4], index: 1, kind: input, shape index: {}]
  %s2 = inlined_call_operand.vmem [shape: f32[8,1], index: 2, kind: input, shape index: {}]
  %s3 = inlined_call_operand.vmem [shape: bf16[9,8,8], index: 3, kind: input, shape index: {}]
  %s4 = inlined_call_operand.vmem [shape: f32[8,1], index: 4, kind: input, shape index: {}]
  %s5 = inlined_call_operand.hbm [shape: f32[2,8,256], index: 5, kind: output, shape index: {}]
  %s6 = sld [smem:[#allocation0]]
  $region53: #{tpu_custom_call.1} parent=0
    _
  %s8 = ssub.s32 1, %s6
  %s9 = scalar_select 0, %s8, %s6
  $region1: #{tpu_custom_call.1} parent=0
    #allocation2 [shape = 'u8[16384]{0}', space=vmem, size = 0x4000, scoped, tag = 'output window, operand 0']
    #allocation3 [shape = 's32[2]{0}', space=sflag, size = 0x8, scoped, tag = 'scoped memory for tpu_custom_call.1']
    %10 = vsyncpa [#allocation3], 0
    %s11 = scalar_lea.sflag [#allocation3], 1
    %12 = vsyncpa %s11, 0
    loop: start=0, step=1, limit=4
    $region2: #{tpu_custom_call.1} parent=1 // loop_pre_header
      _
    $region3: #{tpu_custom_call.1} parent=1 // loop_header
      %s14 = sphi 0, %s18
      %p15 = scmp.ge.s32.totalorder %s14, 4
      %s24 = sphi 0, %s26
      %s27 = sphi 0, %s24
      %s28 = sphi 0, %s27
      %s44 = sphi 0, %s28
      %s48 = sphi 0, %s48
      %s50 = sphi 0, %s48
      %s51 = sphi 0, %s50
      %s65 = sphi 0, %s51
      %s69 = sphi 0, %s69
      %s71 = sphi 0, %s69
      %s72 = sphi 0, %s71
      %s86 = sphi 0, %s72
      %s90 = sphi 0, %s90
      %s92 = sphi 0, %s90
      %s93 = sphi 0, %s92
      %s107 = sphi 0, %s93
      %s111 = sphi 0, %s111
      %s113 = sphi 0, %s111
      %s114 = sphi 0, %s113
      %s128 = sphi 0, %s114
      %s134 = sphi 0, %s136
      %s137 = sphi 0, %s134
      %s138 = sphi 0, %s137
      %s154 = sphi 0, %s138
    $region4: #{tpu_custom_call.1} parent=1 // loop_header_branch
      %17 = sbr.rel (%p15) target = $region8
    $region5: #{tpu_custom_call.1} parent=1 // loop_body
      %s19 = ssub.s32 %s14, 1
      %s20 = ssub.s32 %s14, 2
      %s21 = sadd.s32 %s14, 1
      %s22 = ssub.s32 %s14, %s21
      %p23 = scmp.eq.s32.totalorder %s22, 0
      %s25 = sadd.s32 %s24, 1
      %s26 = scalar_select %p23, %s24, %s25
      %p29 = pneg %p23
      %p30 = scmp.eq.s32.totalorder %s14, 1
      %p31 = por %p29, %p30
      %p32 = scmp.ne.s32.totalorder %s24, %s27
      %p33 = scmp.eq.s32.totalorder %s14, 0
      %p34 = por %p32, %p33
      %p35 = scmp.ne.s32.totalorder %s24, %s27
      %p36 = scmp.eq.s32.totalorder %s19, 1
      %p37 = por %p35, %p36
      %p38 = scmp.ne.s32.totalorder %s27, %s28
      %p39 = scmp.eq.s32.totalorder %s19, 0
      %p40 = por %p38, %p39
      %p41 = scmp.ne.s32.totalorder %s27, %s28
      %p42 = scmp.eq.s32.totalorder %s20, 1
      %p43 = por %p41, %p42
      %p45 = scmp.ne.s32.totalorder %s28, %s44
      %p46 = scmp.eq.s32.totalorder %s20, 0
      %p47 = por %p45, %p46
      %s49 = sadd.s32 %s48, 1
      %p52 = scmp.eq.s32.totalorder %s14, 1
      %p53 = scmp.ne.s32.totalorder %s48, %s50
      %p54 = scmp.eq.s32.totalorder %s14, 0
      %p55 = por %p53, %p54
      %p56 = scmp.ne.s32.totalorder %s48, %s50
      %p57 = scmp.eq.s32.totalorder %s19, 1
      %p58 = por %p56, %p57
      %p59 = scmp.ne.s32.totalorder %s50, %s51
      %p60 = scmp.eq.s32.totalorder %s19, 0
      %p61 = por %p59, %p60
      %p62 = scmp.ne.s32.totalorder %s50, %s51
      %p63 = scmp.eq.s32.totalorder %s20, 1
      %p64 = por %p62, %p63
      %p66 = scmp.ne.s32.totalorder %s51, %s65
      %p67 = scmp.eq.s32.totalorder %s20, 0
      %p68 = por %p66, %p67
      %s70 = sadd.s32 %s69, 1
      %p73 = scmp.eq.s32.totalorder %s14, 1
      %p74 = scmp.ne.s32.totalorder %s69, %s71
      %p75 = scmp.eq.s32.totalorder %s14, 0
      %p76 = por %p74, %p75
      %p77 = scmp.ne.s32.totalorder %s69, %s71
      %p78 = scmp.eq.s32.totalorder %s19, 1
      %p79 = por %p77, %p78
      %p80 = scmp.ne.s32.totalorder %s71, %s72
      %p81 = scmp.eq.s32.totalorder %s19, 0
      %p82 = por %p80, %p81
      %p83 = scmp.ne.s32.totalorder %s71, %s72
      %p84 = scmp.eq.s32.totalorder %s20, 1
      %p85 = por %p83, %p84
      %p87 = scmp.ne.s32.totalorder %s72, %s86
      %p88 = scmp.eq.s32.totalorder %s20, 0
      %p89 = por %p87, %p88
      %s91 = sadd.s32 %s90, 1
      %p94 = scmp.eq.s32.totalorder %s14, 1
      %p95 = scmp.ne.s32.totalorder %s90, %s92
      %p96 = scmp.eq.s32.totalorder %s14, 0
      %p97 = por %p95, %p96
      %p98 = scmp.ne.s32.totalorder %s90, %s92
      %p99 = scmp.eq.s32.totalorder %s19, 1
      %p100 = por %p98, %p99
      %p101 = scmp.ne.s32.totalorder %s92, %s93
      %p102 = scmp.eq.s32.totalorder %s19, 0
      %p103 = por %p101, %p102
      %p104 = scmp.ne.s32.totalorder %s92, %s93
      %p105 = scmp.eq.s32.totalorder %s20, 1
      %p106 = por %p104, %p105
      %p108 = scmp.ne.s32.totalorder %s93, %s107
      %p109 = scmp.eq.s32.totalorder %s20, 0
      %p110 = por %p108, %p109
      %s112 = sadd.s32 %s111, 1
      %p115 = scmp.eq.s32.totalorder %s14, 1
      %p116 = scmp.ne.s32.totalorder %s111, %s113
      %p117 = scmp.eq.s32.totalorder %s14, 0
      %p118 = por %p116, %p117
      %p119 = scmp.ne.s32.totalorder %s111, %s113
      %p120 = scmp.eq.s32.totalorder %s19, 1
      %p121 = por %p119, %p120
      %p122 = scmp.ne.s32.totalorder %s113, %s114
      %p123 = scmp.eq.s32.totalorder %s19, 0
      %p124 = por %p122, %p123
      %p125 = scmp.ne.s32.totalorder %s113, %s114
      %p126 = scmp.eq.s32.totalorder %s20, 1
      %p127 = por %p125, %p126
      %p129 = scmp.ne.s32.totalorder %s114, %s128
      %p130 = scmp.eq.s32.totalorder %s20, 0
      %p131 = por %p129, %p130
      %s132 = ssub.s32 %s14, %s21
      %p133 = scmp.eq.s32.totalorder %s132, 0
      %s135 = sadd.s32 %s134, 1
      %s136 = scalar_select %p133, %s134, %s135
      %p139 = pneg %p133
      %p140 = scmp.eq.s32.totalorder %s14, 1
      %p141 = por %p139, %p140
      %p142 = scmp.ne.s32.totalorder %s134, %s137
      %p143 = scmp.eq.s32.totalorder %s14, 0
      %p144 = por %p142, %p143
      %p145 = scmp.ne.s32.totalorder %s134, %s137
      %p146 = scmp.eq.s32.totalorder %s19, 1
      %p147 = por %p145, %p146
      %p148 = scmp.ne.s32.totalorder %s137, %s138
      %p149 = scmp.eq.s32.totalorder %s19, 0
      %p150 = por %p148, %p149
      %p151 = scmp.ne.s32.totalorder %s137, %s138
      %p152 = scmp.eq.s32.totalorder %s20, 1
      %p153 = por %p151, %p152
      %p155 = scmp.ne.s32.totalorder %s138, %s154
      %p156 = scmp.eq.s32.totalorder %s20, 0
      %p157 = por %p155, %p156
      %p158 = scmp.le.s32.totalorder 1, %s14
      %p159 = scmp.lt.s32.totalorder %s14, 3
      %p160 = pnand %p158, %p159
      %p161 = pneg %p160
      // Predicated region
      $region9: #{tpu_custom_call.1} parent=5 // pred_check
        _
      $region10: #{tpu_custom_call.1} parent=5 // pred_check_branch
        %163 = sbr.rel (%p160) target = $region12
      $region11: #{tpu_custom_call.1} parent=5 // pred_region
        %s164 = ssub.s32 %s14, 1
        // Predicated region
        $region13: #{tpu_custom_call.1} parent=11 // pred_check
          %p165 = pneg %p61
        $region14: #{tpu_custom_call.1} parent=11 // pred_check_branch
          %167 = sbr.rel (%p165) target = $region16
        $region15: #{tpu_custom_call.1} parent=11 // pred_region
          _
        $region16: #{tpu_custom_call.1} parent=11 // pred_fallthru
          _
        // Predicated region
        $region17: #{tpu_custom_call.1} parent=11 // pred_check
          %p168 = pneg %p82
        $region18: #{tpu_custom_call.1} parent=11 // pred_check_branch
          %170 = sbr.rel (%p168) target = $region20
        $region19: #{tpu_custom_call.1} parent=11 // pred_region
          _
        $region20: #{tpu_custom_call.1} parent=11 // pred_fallthru
          _
        // Predicated region
        $region21: #{tpu_custom_call.1} parent=11 // pred_check
          %p171 = pneg %p103
        $region22: #{tpu_custom_call.1} parent=11 // pred_check_branch
          %173 = sbr.rel (%p171) target = $region24
        $region23: #{tpu_custom_call.1} parent=11 // pred_region
          _
        $region24: #{tpu_custom_call.1} parent=11 // pred_fallthru
          _
        // Predicated region
        $region25: #{tpu_custom_call.1} parent=11 // pred_check
          %p174 = pneg %p124
        $region26: #{tpu_custom_call.1} parent=11 // pred_check_branch
          %176 = sbr.rel (%p174) target = $region28
        $region27: #{tpu_custom_call.1} parent=11 // pred_region
          _
        $region28: #{tpu_custom_call.1} parent=11 // pred_fallthru
          _
      $region12: #{tpu_custom_call.1} parent=5 // pred_fallthru
        _
      %p177 = scmp.lt.s32.totalorder %s14, 2
      // Predicated region
      $region29: #{tpu_custom_call.1} parent=5 // pred_check
        %p178 = pneg %p177
      $region30: #{tpu_custom_call.1} parent=5 // pred_check_branch
        %180 = sbr.rel (%p178) target = $region32
      $region31: #{tpu_custom_call.1} parent=5 // pred_region
        // Predicated region
        $region33: #{tpu_custom_call.1} parent=31 // pred_check
          %p181 = pneg %p34
        $region34: #{tpu_custom_call.1} parent=31 // pred_check_branch
          %183 = sbr.rel (%p181) target = $region36
        $region35: #{tpu_custom_call.1} parent=31 // pred_region
          %p184 = scmp.lt.s32.totalorder %s14, 1
          %s185 = scalar_select %p184, %s14, 1
          %s186 = smul.addr %s185, 2
          %s187 = smul.addr %s186, 4
          %s188 = scalar_lea.vmem %s0, %s187
        $region36: #{tpu_custom_call.1} parent=31 // pred_fallthru
          _
      $region32: #{tpu_custom_call.1} parent=5 // pred_fallthru
        _
      %p189 = scmp.le.s32.totalorder 1, %s14
      %p190 = scmp.lt.s32.totalorder %s14, 3
      %p191 = pnand %p189, %p190
      %p192 = pneg %p191
      // Predicated region
      $region37: #{tpu_custom_call.1} parent=5 // pred_check
        _
      $region38: #{tpu_custom_call.1} parent=5 // pred_check_branch
        %194 = sbr.rel (%p191) target = $region40
      $region39: #{tpu_custom_call.1} parent=5 // pred_region
        %s195 = ssub.s32 %s14, 1
        %p196 = scmp.lt.s32.totalorder %s19, 1
        %s197 = scalar_select %p196, %s19, 1
        %s198 = smul.addr %s197, 2
        %s199 = smul.addr %s198, 4
        %s200 = scalar_lea.vmem %s0, %s199
        %p201 = pneg %p40
        %p202 = pneg %p37
        %p203 = pneg %p61
        %p204 = pneg %p58
        %p205 = pneg %p82
        %p206 = pneg %p79
        %p207 = pneg %p103
        %p208 = pneg %p100
        %p209 = pneg %p124
        %p210 = pneg %p121
        %p211 = pneg %p150
        %p212 = pneg %p147
        %s213 = sand.u32 %s137, 1
        %s214 = scalar_lea.sflag [#allocation3], %s213
        %s215 = sand.u32 %s137, 1
        %s216 = smul.addr %s215, 16
        %s217 = scalar_lea.vmem [#allocation2], %s216
        %p218 = scmp.lt.s32.totalorder %s19, 1
        %s219 = scalar_select %p218, %s19, 1
        %s220 = smul.addr %s219, 2
        %s221 = smul.addr %s220, 4
        %s222 = scalar_lea.vmem %s0, %s221
        %v224 = vlaneseq
        %v225 = vand.u32 %v224, 127
        %v226 = vadd.s32 %v225, 128
        %vm227 = vcmp.lt.s32.totalorder %v225, 0
        %v228 = vsub.s32 0, %v225
        %v229 = vsel %vm227, %v228, %v225
        %v230 = vshrl.u32 %v229, 4
        %v231 = vand.u32 %v229, 15
        %v232 = vsub.s32 0, %v231
        %v233 = vsel %vm227, %v232, %v231
        %vm234 = vcmp.lt.s32.totalorder %v226, 0
        %v235 = vsub.s32 0, %v226
        %v236 = vsel %vm234, %v235, %v226
        %v237 = vshrl.u32 %v236, 4
        %v238 = vand.u32 %v236, 15
        %v239 = vsub.s32 0, %v238
        %v240 = vsel %vm234, %v239, %v238
        %vm241 = vcmp.ne.s32.totalorder %v233, 0
        %vm242 = vcmp.ne.s32.totalorder %v240, 0
        %vm243 = vcmp.lt.s32.totalorder %v233, 0
        %vm244 = vcmp.lt.s32.totalorder %v240, 0
        %vm245 = vmand %vm243, %vm241
        %vm246 = vmand %vm244, %vm242
        %v247 = vadd.s32 %v233, 16
        %v248 = vadd.s32 %v240, 16
        %v249 = vsel %vm245, %v247, %v233
        %v250 = vsel %vm246, %v248, %v240
        %vm251 = vcmp.ge.s32.totalorder %v249, 1
        %vm252 = vcmp.ge.s32.totalorder %v250, 1
        %v253 = vsel %vm251, 1, 0
        %v254 = vsel %vm252, 1, 0
        %v255 = vcvt.s32.f32 %v253
        %v256 = vcvt.s32.f32 %v254
        %vm257 = vcmp.le.s32.totalorder %v249, 14
        %vm258 = vcmp.le.s32.totalorder %v250, 14
        %v259 = vsel %vm257, 1, 0
        %v260 = vsel %vm258, 1, 0
        %v261 = vcvt.s32.f32 %v259
        %v262 = vcvt.s32.f32 %v260
        %v263 = vld [vmem:[%s222] sm:$0xff]
        %265 = vst [vmem:[#allocation1] ss:$2 sm:$0xff] %v263
        %v266 = vld.sshfl [vmem:[#allocation1] sm:$0xff pattern:$0x75316420]
        %v267 = vld.sshfl [vmem:[#allocation1 + $0x8] sm:$0xff pattern:$0x75316420]
        %v270 = vpack.c.bf16 %v267, %v266
        %v272 = vunpack.c.l.b16 %v270
        %v273 = vunpack.c.h.b16 %v270
        %v274 = vpack.c.b16 %v272, %v272
        %v275 = vpack.c.b16 %v273, %v273
        %s276 = scalar_lea.vmem %s1, 4
        %v277 = vld [vmem:[%s276] sm:$0xf]
        %s278 = scalar_lea.vmem %s1, 16
        %v279 = vld [vmem:[%s278] sm:$0xf]
        %vm280 = vcmask 31744
        %v282 = vsel %vm280, %v279, 0
        %vm284 = vcmask 1041408
        %v286 = vsel %vm284, %v274, 0
        %v289 = vsel %vm284, %v275, 0
        %291 = vmatpush.bf16.msra.mxu0 0
        %292 = vmatpush.bf16.msra.mxu0 0
        %293 = vmatpush.bf16.msra.mxu0 0
        %294 = vmatpush.bf16.msra.mxu0 0
        %295 = vmatpush.bf16.msra.mxu0 0
        %296 = vmatpush.bf16.msra.mxu0 0
        %297 = vmatpush.bf16.msra.mxu0 0
        %298 = vmatpush.bf16.msra.mxu0 %v286
        %299 = vmatmul.bf16.gmra.mxu0 %v282
        %v300 = vpop.f32.mrf.mxu0
        %v301 = vadd.f32 0.0, %v300
        %v302 = vpop.f32.mrf.mxu0
        %303 = vdwg.mxu0
        %304 = vmatpush.bf16.msra.mxu0 0
        %305 = vmatpush.bf16.msra.mxu0 0
        %306 = vmatpush.bf16.msra.mxu0 0
        %307 = vmatpush.bf16.msra.mxu0 0
        %308 = vmatpush.bf16.msra.mxu0 0
        %309 = vmatpush.bf16.msra.mxu0 0
        %310 = vmatpush.bf16.msra.mxu0 0
        %311 = vmatpush.bf16.msra.mxu0 %v289
        %312 = vmatmul.bf16.gmra.mxu0 %v282
        %v313 = vpop.f32.mrf.mxu0
        %v314 = vadd.f32 0.0, %v313
        %v315 = vpop.f32.mrf.mxu0
        %316 = vdwg.mxu0
        %318 = vrot.lane.b32.xlu0 0, 16
        %v319 = vpop.permute.xlu0 %318
        %320 = vrot.lane.b32.xlu0 %v274, 16
        %v321 = vpop.permute.xlu0 %320
        %322 = vrot.lane.b32.xlu0 %v275, 16
        %v323 = vpop.permute.xlu0 %322
        %vm324 = vcmask 130048
        %v325 = vsel %vm324, %v319, %v321
        %v326 = vsel %vm324, %v321, %v323
        %v328 = vsel %vm280, %v277, 0
        %v331 = vsel %vm284, %v325, 0
        %v334 = vsel %vm284, %v326, 0
        %336 = vmatpush.bf16.msra.mxu0 0
        %337 = vmatpush.bf16.msra.mxu0 0
        %338 = vmatpush.bf16.msra.mxu0 0
        %339 = vmatpush.bf16.msra.mxu0 0
        %340 = vmatpush.bf16.msra.mxu0 0
        %341 = vmatpush.bf16.msra.mxu0 0
        %342 = vmatpush.bf16.msra.mxu0 0
        %343 = vmatpush.bf16.msra.mxu0 %v331
        %344 = vmatmul.bf16.gmra.mxu0 %v328
        %v345 = vpop.f32.mrf.mxu0
        %v346 = vadd.f32 %v301, %v345
        %v347 = vpop.f32.mrf.mxu0
        %348 = vdwg.mxu0
        %349 = vmatpush.bf16.msra.mxu0 0
        %350 = vmatpush.bf16.msra.mxu0 0
        %351 = vmatpush.bf16.msra.mxu0 0
        %352 = vmatpush.bf16.msra.mxu0 0
        %353 = vmatpush.bf16.msra.mxu0 0
        %354 = vmatpush.bf16.msra.mxu0 0
        %355 = vmatpush.bf16.msra.mxu0 0
        %356 = vmatpush.bf16.msra.mxu0 %v334
        %357 = vmatmul.bf16.gmra.mxu0 %v328
        %v358 = vpop.f32.mrf.mxu0
        %v359 = vadd.f32 %v314, %v358
        %v360 = vpop.f32.mrf.mxu0
        %361 = vdwg.mxu0
        %s362 = scalar_lea.vmem %s1, 28
        %v363 = vld [vmem:[%s362] sm:$0xf]
        %364 = vrot.lane.b32.xlu0 %v274, 112
        %v365 = vpop.permute.xlu0 %364
        %366 = vrot.lane.b32.xlu0 %v275, 112
        %v367 = vpop.permute.xlu0 %366
        %368 = vrot.lane.b32.xlu0 0, 112
        %v369 = vpop.permute.xlu0 %368
        %vm370 = vcmask 916480
        %v371 = vsel %vm370, %v365, %v367
        %v372 = vsel %vm370, %v367, %v369
        %v374 = vsel %vm280, %v363, 0
        %v377 = vsel %vm284, %v371, 0
        %v380 = vsel %vm284, %v372, 0
        %382 = vmatpush.bf16.msra.mxu0 0
        %383 = vmatpush.bf16.msra.mxu0 0
        %384 = vmatpush.bf16.msra.mxu0 0
        %385 = vmatpush.bf16.msra.mxu0 0
        %386 = vmatpush.bf16.msra.mxu0 0
        %387 = vmatpush.bf16.msra.mxu0 0
        %388 = vmatpush.bf16.msra.mxu0 0
        %389 = vmatpush.bf16.msra.mxu0 %v377
        %390 = vmatmul.bf16.gmra.mxu0 %v374
        %v391 = vpop.f32.mrf.mxu0
        %v392 = vadd.f32 0.0, %v391
        %v393 = vpop.f32.mrf.mxu0
        %394 = vdwg.mxu0
        %395 = vmatpush.bf16.msra.mxu0 0
        %396 = vmatpush.bf16.msra.mxu0 0
        %397 = vmatpush.bf16.msra.mxu0 0
        %398 = vmatpush.bf16.msra.mxu0 0
        %399 = vmatpush.bf16.msra.mxu0 0
        %400 = vmatpush.bf16.msra.mxu0 0
        %401 = vmatpush.bf16.msra.mxu0 0
        %402 = vmatpush.bf16.msra.mxu0 %v380
        %403 = vmatmul.bf16.gmra.mxu0 %v374
        %v404 = vpop.f32.mrf.mxu0
        %v405 = vadd.f32 0.0, %v404
        %v406 = vpop.f32.mrf.mxu0
        %407 = vdwg.mxu0
        %v408 = vadd.f32 %v346, %v392
        %v409 = vadd.f32 %v359, %v405
        %v410 = vld [vmem:[%s1] sm:$0xf]
        %s411 = scalar_lea.vmem %s1, 12
        %v412 = vld [vmem:[%s411] sm:$0xf]
        %413 = vrot.lane.b32.xlu0 0, 1
        %v414 = vpop.permute.xlu0 %413
        %415 = vrot.lane.b32.xlu0 %v274, 1
        %v416 = vpop.permute.xlu0 %415
        %417 = vrot.lane.b32.xlu0 %v275, 1
        %v418 = vpop.permute.xlu0 %417
        %vm419 = vcmask 7168
        %v420 = vsel %vm419, %v414, %v416
        %v421 = vsel %vm419, %v416, %v418
        %v423 = vsel %vm280, %v412, 0
        %v426 = vsel %vm284, %v420, 0
        %v429 = vsel %vm284, %v421, 0
        %431 = vmatpush.bf16.msra.mxu0 0
        %432 = vmatpush.bf16.msra.mxu0 0
        %433 = vmatpush.bf16.msra.mxu0 0
        %434 = vmatpush.bf16.msra.mxu0 0
        %435 = vmatpush.bf16.msra.mxu0 0
        %436 = vmatpush.bf16.msra.mxu0 0
        %437 = vmatpush.bf16.msra.mxu0 0
        %438 = vmatpush.bf16.msra.mxu0 %v426
        %439 = vmatmul.bf16.gmra.mxu0 %v423
        %v440 = vpop.f32.mrf.mxu0
        %v441 = vadd.f32 0.0, %v440
        %v442 = vpop.f32.mrf.mxu0
        %443 = vdwg.mxu0
        %444 = vmatpush.bf16.msra.mxu0 0
        %445 = vmatpush.bf16.msra.mxu0 0
        %446 = vmatpush.bf16.msra.mxu0 0
        %447 = vmatpush.bf16.msra.mxu0 0
        %448 = vmatpush.bf16.msra.mxu0 0
        %449 = vmatpush.bf16.msra.mxu0 0
        %450 = vmatpush.bf16.msra.mxu0 0
        %451 = vmatpush.bf16.msra.mxu0 %v429
        %452 = vmatmul.bf16.gmra.mxu0 %v423
        %v453 = vpop.f32.mrf.mxu0
        %v454 = vadd.f32 0.0, %v453
        %v455 = vpop.f32.mrf.mxu0
        %456 = vdwg.mxu0
        %457 = vrot.lane.b32.xlu0 0, 17
        %v458 = vpop.permute.xlu0 %457
        %459 = vrot.lane.b32.xlu0 %v274, 17
        %v460 = vpop.permute.xlu0 %459
        %461 = vrot.lane.b32.xlu0 %v275, 17
        %v462 = vpop.permute.xlu0 %461
        %vm463 = vcmask 138240
        %v464 = vsel %vm463, %v458, %v460
        %v465 = vsel %vm463, %v460, %v462
        %v467 = vsel %vm280, %v410, 0
        %v470 = vsel %vm284, %v464, 0
        %v473 = vsel %vm284, %v465, 0
        %475 = vmatpush.bf16.msra.mxu0 0
        %476 = vmatpush.bf16.msra.mxu0 0
        %477 = vmatpush.bf16.msra.mxu0 0
        %478 = vmatpush.bf16.msra.mxu0 0
        %479 = vmatpush.bf16.msra.mxu0 0
        %480 = vmatpush.bf16.msra.mxu0 0
        %481 = vmatpush.bf16.msra.mxu0 0
        %482 = vmatpush.bf16.msra.mxu0 %v470
        %483 = vmatmul.bf16.gmra.mxu0 %v467
        %v484 = vpop.f32.mrf.mxu0
        %v485 = vadd.f32 %v441, %v484
        %v486 = vpop.f32.mrf.mxu0
        %487 = vdwg.mxu0
        %488 = vmatpush.bf16.msra.mxu0 0
        %489 = vmatpush.bf16.msra.mxu0 0
        %490 = vmatpush.bf16.msra.mxu0 0
        %491 = vmatpush.bf16.msra.mxu0 0
        %492 = vmatpush.bf16.msra.mxu0 0
        %493 = vmatpush.bf16.msra.mxu0 0
        %494 = vmatpush.bf16.msra.mxu0 0
        %495 = vmatpush.bf16.msra.mxu0 %v473
        %496 = vmatmul.bf16.gmra.mxu0 %v467
        %v497 = vpop.f32.mrf.mxu0
        %v498 = vadd.f32 %v454, %v497
        %v499 = vpop.f32.mrf.mxu0
        %500 = vdwg.mxu0
        %s501 = scalar_lea.vmem %s1, 24
        %v502 = vld [vmem:[%s501] sm:$0xf]
        %503 = vrot.lane.b32.xlu0 %v274, 113
        %v504 = vpop.permute.xlu0 %503
        %505 = vrot.lane.b32.xlu0 %v275, 113
        %v506 = vpop.permute.xlu0 %505
        %507 = vrot.lane.b32.xlu0 0, 113
        %v508 = vpop.permute.xlu0 %507
        %vm509 = vcmask 924672
        %v510 = vsel %vm509, %v504, %v506
        %v511 = vsel %vm509, %v506, %v508
        %v513 = vsel %vm280, %v502, 0
        %v516 = vsel %vm284, %v510, 0
        %v519 = vsel %vm284, %v511, 0
        %521 = vmatpush.bf16.msra.mxu0 0
        %522 = vmatpush.bf16.msra.mxu0 0
        %523 = vmatpush.bf16.msra.mxu0 0
        %524 = vmatpush.bf16.msra.mxu0 0
        %525 = vmatpush.bf16.msra.mxu0 0
        %526 = vmatpush.bf16.msra.mxu0 0
        %527 = vmatpush.bf16.msra.mxu0 0
        %528 = vmatpush.bf16.msra.mxu0 %v516
        %529 = vmatmul.bf16.gmra.mxu0 %v513
        %v530 = vpop.f32.mrf.mxu0
        %v531 = vadd.f32 0.0, %v530
        %v532 = vpop.f32.mrf.mxu0
        %533 = vdwg.mxu0
        %534 = vmatpush.bf16.msra.mxu0 0
        %535 = vmatpush.bf16.msra.mxu0 0
        %536 = vmatpush.bf16.msra.mxu0 0
        %537 = vmatpush.bf16.msra.mxu0 0
        %538 = vmatpush.bf16.msra.mxu0 0
        %539 = vmatpush.bf16.msra.mxu0 0
        %540 = vmatpush.bf16.msra.mxu0 0
        %541 = vmatpush.bf16.msra.mxu0 %v519
        %542 = vmatmul.bf16.gmra.mxu0 %v513
        %v543 = vpop.f32.mrf.mxu0
        %v544 = vadd.f32 0.0, %v543
        %v545 = vpop.f32.mrf.mxu0
        %546 = vdwg.mxu0
        %v547 = vadd.f32 %v485, %v531
        %v548 = vadd.f32 %v498, %v544
        %v549 = vmul.f32 %v547, %v255
        %v550 = vmul.f32 %v548, %v256
        %v551 = vadd.f32 %v408, %v549
        %v552 = vadd.f32 %v409, %v550
        %s553 = scalar_lea.vmem %s1, 8
        %v554 = vld [vmem:[%s553] sm:$0xf]
        %s555 = scalar_lea.vmem %s1, 20
        %v556 = vld [vmem:[%s555] sm:$0xf]
        %557 = vrot.lane.b32.xlu0 %v274, 127
        %v558 = vpop.permute.xlu0 %557
        %559 = vrot.lane.b32.xlu0 %v275, 127
        %v560 = vpop.permute.xlu0 %559
        %561 = vrot.lane.b32.xlu0 0, 127
        %v562 = vpop.permute.xlu0 %561
        %vm563 = vcmask 1039360
        %v564 = vsel %vm563, %v558, %v560
        %v565 = vsel %vm563, %v560, %v562
        %v567 = vsel %vm280, %v556, 0
        %v570 = vsel %vm284, %v564, 0
        %v573 = vsel %vm284, %v565, 0
        %575 = vmatpush.bf16.msra.mxu0 0
        %576 = vmatpush.bf16.msra.mxu0 0
        %577 = vmatpush.bf16.msra.mxu0 0
        %578 = vmatpush.bf16.msra.mxu0 0
        %579 = vmatpush.bf16.msra.mxu0 0
        %580 = vmatpush.bf16.msra.mxu0 0
        %581 = vmatpush.bf16.msra.mxu0 0
        %582 = vmatpush.bf16.msra.mxu0 %v570
        %583 = vmatmul.bf16.gmra.mxu0 %v567
        %v584 = vpop.f32.mrf.mxu0
        %v585 = vadd.f32 0.0, %v584
        %v586 = vpop.f32.mrf.mxu0
        %587 = vdwg.mxu0
        %588 = vmatpush.bf16.msra.mxu0 0
        %589 = vmatpush.bf16.msra.mxu0 0
        %590 = vmatpush.bf16.msra.mxu0 0
        %591 = vmatpush.bf16.msra.mxu0 0
        %592 = vmatpush.bf16.msra.mxu0 0
        %593 = vmatpush.bf16.msra.mxu0 0
        %594 = vmatpush.bf16.msra.mxu0 0
        %595 = vmatpush.bf16.msra.mxu0 %v573
        %596 = vmatmul.bf16.gmra.mxu0 %v567
        %v597 = vpop.f32.mrf.mxu0
        %v598 = vadd.f32 0.0, %v597
        %v599 = vpop.f32.mrf.mxu0
        %600 = vdwg.mxu0
        %601 = vrot.lane.b32.xlu0 0, 15
        %v602 = vpop.permute.xlu0 %601
        %603 = vrot.lane.b32.xlu0 %v274, 15
        %v604 = vpop.permute.xlu0 %603
        %605 = vrot.lane.b32.xlu0 %v275, 15
        %v606 = vpop.permute.xlu0 %605
        %vm607 = vcmask 121856
        %v608 = vsel %vm607, %v602, %v604
        %v609 = vsel %vm607, %v604, %v606
        %v611 = vsel %vm280, %v554, 0
        %v614 = vsel %vm284, %v608, 0
        %v617 = vsel %vm284, %v609, 0
        %619 = vmatpush.bf16.msra.mxu0 0
        %620 = vmatpush.bf16.msra.mxu0 0
        %621 = vmatpush.bf16.msra.mxu0 0
        %622 = vmatpush.bf16.msra.mxu0 0
        %623 = vmatpush.bf16.msra.mxu0 0
        %624 = vmatpush.bf16.msra.mxu0 0
        %625 = vmatpush.bf16.msra.mxu0 0
        %626 = vmatpush.bf16.msra.mxu0 %v614
        %627 = vmatmul.bf16.gmra.mxu0 %v611
        %v628 = vpop.f32.mrf.mxu0
        %v629 = vadd.f32 %v585, %v628
        %v630 = vpop.f32.mrf.mxu0
        %631 = vdwg.mxu0
        %632 = vmatpush.bf16.msra.mxu0 0
        %633 = vmatpush.bf16.msra.mxu0 0
        %634 = vmatpush.bf16.msra.mxu0 0
        %635 = vmatpush.bf16.msra.mxu0 0
        %636 = vmatpush.bf16.msra.mxu0 0
        %637 = vmatpush.bf16.msra.mxu0 0
        %638 = vmatpush.bf16.msra.mxu0 0
        %639 = vmatpush.bf16.msra.mxu0 %v617
        %640 = vmatmul.bf16.gmra.mxu0 %v611
        %v641 = vpop.f32.mrf.mxu0
        %v642 = vadd.f32 %v598, %v641
        %v643 = vpop.f32.mrf.mxu0
        %644 = vdwg.mxu0
        %s645 = scalar_lea.vmem %s1, 32
        %v646 = vld [vmem:[%s645] sm:$0xf]
        %647 = vrot.lane.b32.xlu0 %v274, 111
        %v648 = vpop.permute.xlu0 %647
        %649 = vrot.lane.b32.xlu0 %v275, 111
        %v650 = vpop.permute.xlu0 %649
        %651 = vrot.lane.b32.xlu0 0, 111
        %v652 = vpop.permute.xlu0 %651
        %vm653 = vcmask 908288
        %v654 = vsel %vm653, %v648, %v650
        %v655 = vsel %vm653, %v650, %v652
        %v657 = vsel %vm280, %v646, 0
        %v660 = vsel %vm284, %v654, 0
        %v663 = vsel %vm284, %v655, 0
        %665 = vmatpush.bf16.msra.mxu0 0
        %666 = vmatpush.bf16.msra.mxu0 0
        %667 = vmatpush.bf16.msra.mxu0 0
        %668 = vmatpush.bf16.msra.mxu0 0
        %669 = vmatpush.bf16.msra.mxu0 0
        %670 = vmatpush.bf16.msra.mxu0 0
        %671 = vmatpush.bf16.msra.mxu0 0
        %672 = vmatpush.bf16.msra.mxu0 %v660
        %673 = vmatmul.bf16.gmra.mxu0 %v657
        %v674 = vpop.f32.mrf.mxu0
        %v675 = vadd.f32 0.0, %v674
        %v676 = vpop.f32.mrf.mxu0
        %677 = vdwg.mxu0
        %678 = vmatpush.bf16.msra.mxu0 0
        %679 = vmatpush.bf16.msra.mxu0 0
        %680 = vmatpush.bf16.msra.mxu0 0
        %681 = vmatpush.bf16.msra.mxu0 0
        %682 = vmatpush.bf16.msra.mxu0 0
        %683 = vmatpush.bf16.msra.mxu0 0
        %684 = vmatpush.bf16.msra.mxu0 0
        %685 = vmatpush.bf16.msra.mxu0 %v663
        %686 = vmatmul.bf16.gmra.mxu0 %v657
        %v687 = vpop.f32.mrf.mxu0
        %v688 = vadd.f32 0.0, %v687
        %v689 = vpop.f32.mrf.mxu0
        %690 = vdwg.mxu0
        %v691 = vadd.f32 %v629, %v675
        %v692 = vadd.f32 %v642, %v688
        %v693 = vmul.f32 %v691, %v261
        %v694 = vmul.f32 %v692, %v262
        %v695 = vadd.f32 %v551, %v693
        %v696 = vadd.f32 %v552, %v694
        %v697 = vld [vmem:[%s2] sm:$0xff]
        %699 = vset.pattern.permute.xlu0 0
        %700 = vperm.xlu0 %699, %v697
        %v701 = vpop.permute.xlu0 %700
        %v703 = vadd.f32 %v695, %v701
        %v704 = vadd.f32 %v696, %v701
        %v705 = vmax.f32 %v703, 0.0
        %v706 = vmax.f32 %v704, 0.0
        %v707 = vpack.c.bf16 %v706, %v705
        %v709 = vunpack.c.l.b16 %v707
        %v710 = vunpack.c.h.b16 %v707
        %v711 = vpack.c.b16 %v709, %v709
        %v712 = vpack.c.b16 %v710, %v710
        %s713 = scalar_lea.vmem %s3, 4
        %v714 = vld [vmem:[%s713] sm:$0xf]
        %s715 = scalar_lea.vmem %s3, 16
        %v716 = vld [vmem:[%s715] sm:$0xf]
        %vm717 = vcmask 64512
        %v719 = vsel %vm717, %v716, 0
        %vm721 = vcmask 1043456
        %v723 = vsel %vm721, %v711, 0
        %v726 = vsel %vm721, %v712, 0
        %728 = vmatpush.bf16.msra.mxu0 0
        %729 = vmatpush.bf16.msra.mxu0 0
        %730 = vmatpush.bf16.msra.mxu0 0
        %731 = vmatpush.bf16.msra.mxu0 0
        %732 = vmatpush.bf16.msra.mxu0 0
        %733 = vmatpush.bf16.msra.mxu0 0
        %734 = vmatpush.bf16.msra.mxu0 0
        %735 = vmatpush.bf16.msra.mxu0 %v723
        %736 = vmatmul.bf16.gmra.mxu0 %v719
        %v737 = vpop.f32.mrf.mxu0
        %v738 = vadd.f32 0.0, %v737
        %v739 = vpop.f32.mrf.mxu0
        %740 = vdwg.mxu0
        %741 = vmatpush.bf16.msra.mxu0 0
        %742 = vmatpush.bf16.msra.mxu0 0
        %743 = vmatpush.bf16.msra.mxu0 0
        %744 = vmatpush.bf16.msra.mxu0 0
        %745 = vmatpush.bf16.msra.mxu0 0
        %746 = vmatpush.bf16.msra.mxu0 0
        %747 = vmatpush.bf16.msra.mxu0 0
        %748 = vmatpush.bf16.msra.mxu0 %v726
        %749 = vmatmul.bf16.gmra.mxu0 %v719
        %v750 = vpop.f32.mrf.mxu0
        %v751 = vadd.f32 0.0, %v750
        %v752 = vpop.f32.mrf.mxu0
        %753 = vdwg.mxu0
        %754 = vrot.lane.b32.xlu0 %v711, 16
        %v755 = vpop.permute.xlu0 %754
        %756 = vrot.lane.b32.xlu0 %v712, 16
        %v757 = vpop.permute.xlu0 %756
        %v758 = vsel %vm324, %v319, %v755
        %v759 = vsel %vm324, %v755, %v757
        %v761 = vsel %vm717, %v714, 0
        %v764 = vsel %vm721, %v758, 0
        %v767 = vsel %vm721, %v759, 0
        %769 = vmatpush.bf16.msra.mxu0 0
        %770 = vmatpush.bf16.msra.mxu0 0
        %771 = vmatpush.bf16.msra.mxu0 0
        %772 = vmatpush.bf16.msra.mxu0 0
        %773 = vmatpush.bf16.msra.mxu0 0
        %774 = vmatpush.bf16.msra.mxu0 0
        %775 = vmatpush.bf16.msra.mxu0 0
        %776 = vmatpush.bf16.msra.mxu0 %v764
        %777 = vmatmul.bf16.gmra.mxu0 %v761
        %v778 = vpop.f32.mrf.mxu0
        %v779 = vadd.f32 %v738, %v778
        %v780 = vpop.f32.mrf.mxu0
        %781 = vdwg.mxu0
        %782 = vmatpush.bf16.msra.mxu0 0
        %783 = vmatpush.bf16.msra.mxu0 0
        %784 = vmatpush.bf16.msra.mxu0 0
        %785 = vmatpush.bf16.msra.mxu0 0
        %786 = vmatpush.bf16.msra.mxu0 0
        %787 = vmatpush.bf16.msra.mxu0 0
        %788 = vmatpush.bf16.msra.mxu0 0
        %789 = vmatpush.bf16.msra.mxu0 %v767
        %790 = vmatmul.bf16.gmra.mxu0 %v761
        %v791 = vpop.f32.mrf.mxu0
        %v792 = vadd.f32 %v751, %v791
        %v793 = vpop.f32.mrf.mxu0
        %794 = vdwg.mxu0
        %s795 = scalar_lea.vmem %s3, 28
        %v796 = vld [vmem:[%s795] sm:$0xf]
        %797 = vrot.lane.b32.xlu0 %v711, 112
        %v798 = vpop.permute.xlu0 %797
        %799 = vrot.lane.b32.xlu0 %v712, 112
        %v800 = vpop.permute.xlu0 %799
        %v801 = vsel %vm370, %v798, %v800
        %v802 = vsel %vm370, %v800, %v369
        %v804 = vsel %vm717, %v796, 0
        %v807 = vsel %vm721, %v801, 0
        %v810 = vsel %vm721, %v802, 0
        %812 = vmatpush.bf16.msra.mxu0 0
        %813 = vmatpush.bf16.msra.mxu0 0
        %814 = vmatpush.bf16.msra.mxu0 0
        %815 = vmatpush.bf16.msra.mxu0 0
        %816 = vmatpush.bf16.msra.mxu0 0
        %817 = vmatpush.bf16.msra.mxu0 0
        %818 = vmatpush.bf16.msra.mxu0 0
        %819 = vmatpush.bf16.msra.mxu0 %v807
        %820 = vmatmul.bf16.gmra.mxu0 %v804
        %v821 = vpop.f32.mrf.mxu0
        %v822 = vadd.f32 0.0, %v821
        %v823 = vpop.f32.mrf.mxu0
        %824 = vdwg.mxu0
        %825 = vmatpush.bf16.msra.mxu0 0
        %826 = vmatpush.bf16.msra.mxu0 0
        %827 = vmatpush.bf16.msra.mxu0 0
        %828 = vmatpush.bf16.msra.mxu0 0
        %829 = vmatpush.bf16.msra.mxu0 0
        %830 = vmatpush.bf16.msra.mxu0 0
        %831 = vmatpush.bf16.msra.mxu0 0
        %832 = vmatpush.bf16.msra.mxu0 %v810
        %833 = vmatmul.bf16.gmra.mxu0 %v804
        %v834 = vpop.f32.mrf.mxu0
        %v835 = vadd.f32 0.0, %v834
        %v836 = vpop.f32.mrf.mxu0
        %837 = vdwg.mxu0
        %v838 = vadd.f32 %v779, %v822
        %v839 = vadd.f32 %v792, %v835
        %v840 = vld [vmem:[%s3] sm:$0xf]
        %s841 = scalar_lea.vmem %s3, 12
        %v842 = vld [vmem:[%s841] sm:$0xf]
        %843 = vrot.lane.b32.xlu0 %v711, 1
        %v844 = vpop.permute.xlu0 %843
        %845 = vrot.lane.b32.xlu0 %v712, 1
        %v846 = vpop.permute.xlu0 %845
        %v847 = vsel %vm419, %v414, %v844
        %v848 = vsel %vm419, %v844, %v846
        %v850 = vsel %vm717, %v842, 0
        %v853 = vsel %vm721, %v847, 0
        %v856 = vsel %vm721, %v848, 0
        %858 = vmatpush.bf16.msra.mxu0 0
        %859 = vmatpush.bf16.msra.mxu0 0
        %860 = vmatpush.bf16.msra.mxu0 0
        %861 = vmatpush.bf16.msra.mxu0 0
        %862 = vmatpush.bf16.msra.mxu0 0
        %863 = vmatpush.bf16.msra.mxu0 0
        %864 = vmatpush.bf16.msra.mxu0 0
        %865 = vmatpush.bf16.msra.mxu0 %v853
        %866 = vmatmul.bf16.gmra.mxu0 %v850
        %v867 = vpop.f32.mrf.mxu0
        %v868 = vadd.f32 0.0, %v867
        %v869 = vpop.f32.mrf.mxu0
        %870 = vdwg.mxu0
        %871 = vmatpush.bf16.msra.mxu0 0
        %872 = vmatpush.bf16.msra.mxu0 0
        %873 = vmatpush.bf16.msra.mxu0 0
        %874 = vmatpush.bf16.msra.mxu0 0
        %875 = vmatpush.bf16.msra.mxu0 0
        %876 = vmatpush.bf16.msra.mxu0 0
        %877 = vmatpush.bf16.msra.mxu0 0
        %878 = vmatpush.bf16.msra.mxu0 %v856
        %879 = vmatmul.bf16.gmra.mxu0 %v850
        %v880 = vpop.f32.mrf.mxu0
        %v881 = vadd.f32 0.0, %v880
        %v882 = vpop.f32.mrf.mxu0
        %883 = vdwg.mxu0
        %884 = vrot.lane.b32.xlu0 %v711, 17
        %v885 = vpop.permute.xlu0 %884
        %886 = vrot.lane.b32.xlu0 %v712, 17
        %v887 = vpop.permute.xlu0 %886
        %v888 = vsel %vm463, %v458, %v885
        %v889 = vsel %vm463, %v885, %v887
        %v891 = vsel %vm717, %v840, 0
        %v894 = vsel %vm721, %v888, 0
        %v897 = vsel %vm721, %v889, 0
        %899 = vmatpush.bf16.msra.mxu0 0
        %900 = vmatpush.bf16.msra.mxu0 0
        %901 = vmatpush.bf16.msra.mxu0 0
        %902 = vmatpush.bf16.msra.mxu0 0
        %903 = vmatpush.bf16.msra.mxu0 0
        %904 = vmatpush.bf16.msra.mxu0 0
        %905 = vmatpush.bf16.msra.mxu0 0
        %906 = vmatpush.bf16.msra.mxu0 %v894
        %907 = vmatmul.bf16.gmra.mxu0 %v891
        %v908 = vpop.f32.mrf.mxu0
        %v909 = vadd.f32 %v868, %v908
        %v910 = vpop.f32.mrf.mxu0
        %911 = vdwg.mxu0
        %912 = vmatpush.bf16.msra.mxu0 0
        %913 = vmatpush.bf16.msra.mxu0 0
        %914 = vmatpush.bf16.msra.mxu0 0
        %915 = vmatpush.bf16.msra.mxu0 0
        %916 = vmatpush.bf16.msra.mxu0 0
        %917 = vmatpush.bf16.msra.mxu0 0
        %918 = vmatpush.bf16.msra.mxu0 0
        %919 = vmatpush.bf16.msra.mxu0 %v897
        %920 = vmatmul.bf16.gmra.mxu0 %v891
        %v921 = vpop.f32.mrf.mxu0
        %v922 = vadd.f32 %v881, %v921
        %v923 = vpop.f32.mrf.mxu0
        %924 = vdwg.mxu0
        %s925 = scalar_lea.vmem %s3, 24
        %v926 = vld [vmem:[%s925] sm:$0xf]
        %927 = vrot.lane.b32.xlu0 %v711, 113
        %v928 = vpop.permute.xlu0 %927
        %929 = vrot.lane.b32.xlu0 %v712, 113
        %v930 = vpop.permute.xlu0 %929
        %v931 = vsel %vm509, %v928, %v930
        %v932 = vsel %vm509, %v930, %v508
        %v934 = vsel %vm717, %v926, 0
        %v937 = vsel %vm721, %v931, 0
        %v940 = vsel %vm721, %v932, 0
        %942 = vmatpush.bf16.msra.mxu0 0
        %943 = vmatpush.bf16.msra.mxu0 0
        %944 = vmatpush.bf16.msra.mxu0 0
        %945 = vmatpush.bf16.msra.mxu0 0
        %946 = vmatpush.bf16.msra.mxu0 0
        %947 = vmatpush.bf16.msra.mxu0 0
        %948 = vmatpush.bf16.msra.mxu0 0
        %949 = vmatpush.bf16.msra.mxu0 %v937
        %950 = vmatmul.bf16.gmra.mxu0 %v934
        %v951 = vpop.f32.mrf.mxu0
        %v952 = vadd.f32 0.0, %v951
        %v953 = vpop.f32.mrf.mxu0
        %954 = vdwg.mxu0
        %955 = vmatpush.bf16.msra.mxu0 0
        %956 = vmatpush.bf16.msra.mxu0 0
        %957 = vmatpush.bf16.msra.mxu0 0
        %958 = vmatpush.bf16.msra.mxu0 0
        %959 = vmatpush.bf16.msra.mxu0 0
        %960 = vmatpush.bf16.msra.mxu0 0
        %961 = vmatpush.bf16.msra.mxu0 0
        %962 = vmatpush.bf16.msra.mxu0 %v940
        %963 = vmatmul.bf16.gmra.mxu0 %v934
        %v964 = vpop.f32.mrf.mxu0
        %v965 = vadd.f32 0.0, %v964
        %v966 = vpop.f32.mrf.mxu0
        %967 = vdwg.mxu0
        %v968 = vadd.f32 %v909, %v952
        %v969 = vadd.f32 %v922, %v965
        %v970 = vmul.f32 %v968, %v255
        %v971 = vmul.f32 %v969, %v256
        %v972 = vadd.f32 %v838, %v970
        %v973 = vadd.f32 %v839, %v971
        %s974 = scalar_lea.vmem %s3, 8
        %v975 = vld [vmem:[%s974] sm:$0xf]
        %s976 = scalar_lea.vmem %s3, 20
        %v977 = vld [vmem:[%s976] sm:$0xf]
        %978 = vrot.lane.b32.xlu0 %v711, 127
        %v979 = vpop.permute.xlu0 %978
        %980 = vrot.lane.b32.xlu0 %v712, 127
        %v981 = vpop.permute.xlu0 %980
        %v982 = vsel %vm563, %v979, %v981
        %v983 = vsel %vm563, %v981, %v562
        %v985 = vsel %vm717, %v977, 0
        %v988 = vsel %vm721, %v982, 0
        %v991 = vsel %vm721, %v983, 0
        %993 = vmatpush.bf16.msra.mxu0 0
        %994 = vmatpush.bf16.msra.mxu0 0
        %995 = vmatpush.bf16.msra.mxu0 0
        %996 = vmatpush.bf16.msra.mxu0 0
        %997 = vmatpush.bf16.msra.mxu0 0
        %998 = vmatpush.bf16.msra.mxu0 0
        %999 = vmatpush.bf16.msra.mxu0 0
        %1000 = vmatpush.bf16.msra.mxu0 %v988
        %1001 = vmatmul.bf16.gmra.mxu0 %v985
        %v1002 = vpop.f32.mrf.mxu0
        %v1003 = vadd.f32 0.0, %v1002
        %v1004 = vpop.f32.mrf.mxu0
        %1005 = vdwg.mxu0
        %1006 = vmatpush.bf16.msra.mxu0 0
        %1007 = vmatpush.bf16.msra.mxu0 0
        %1008 = vmatpush.bf16.msra.mxu0 0
        %1009 = vmatpush.bf16.msra.mxu0 0
        %1010 = vmatpush.bf16.msra.mxu0 0
        %1011 = vmatpush.bf16.msra.mxu0 0
        %1012 = vmatpush.bf16.msra.mxu0 0
        %1013 = vmatpush.bf16.msra.mxu0 %v991
        %1014 = vmatmul.bf16.gmra.mxu0 %v985
        %v1015 = vpop.f32.mrf.mxu0
        %v1016 = vadd.f32 0.0, %v1015
        %v1017 = vpop.f32.mrf.mxu0
        %1018 = vdwg.mxu0
        %1019 = vrot.lane.b32.xlu0 %v711, 15
        %v1020 = vpop.permute.xlu0 %1019
        %1021 = vrot.lane.b32.xlu0 %v712, 15
        %v1022 = vpop.permute.xlu0 %1021
        %v1023 = vsel %vm607, %v602, %v1020
        %v1024 = vsel %vm607, %v1020, %v1022
        %v1026 = vsel %vm717, %v975, 0
        %v1029 = vsel %vm721, %v1023, 0
        %v1032 = vsel %vm721, %v1024, 0
        %1034 = vmatpush.bf16.msra.mxu0 0
        %1035 = vmatpush.bf16.msra.mxu0 0
        %1036 = vmatpush.bf16.msra.mxu0 0
        %1037 = vmatpush.bf16.msra.mxu0 0
        %1038 = vmatpush.bf16.msra.mxu0 0
        %1039 = vmatpush.bf16.msra.mxu0 0
        %1040 = vmatpush.bf16.msra.mxu0 0
        %1041 = vmatpush.bf16.msra.mxu0 %v1029
        %1042 = vmatmul.bf16.gmra.mxu0 %v1026
        %v1043 = vpop.f32.mrf.mxu0
        %v1044 = vadd.f32 %v1003, %v1043
        %v1045 = vpop.f32.mrf.mxu0
        %1046 = vdwg.mxu0
        %1047 = vmatpush.bf16.msra.mxu0 0
        %1048 = vmatpush.bf16.msra.mxu0 0
        %1049 = vmatpush.bf16.msra.mxu0 0
        %1050 = vmatpush.bf16.msra.mxu0 0
        %1051 = vmatpush.bf16.msra.mxu0 0
        %1052 = vmatpush.bf16.msra.mxu0 0
        %1053 = vmatpush.bf16.msra.mxu0 0
        %1054 = vmatpush.bf16.msra.mxu0 %v1032
        %1055 = vmatmul.bf16.gmra.mxu0 %v1026
        %v1056 = vpop.f32.mrf.mxu0
        %v1057 = vadd.f32 %v1016, %v1056
        %v1058 = vpop.f32.mrf.mxu0
        %1059 = vdwg.mxu0
        %s1060 = scalar_lea.vmem %s3, 32
        %v1061 = vld [vmem:[%s1060] sm:$0xf]
        %1062 = vrot.lane.b32.xlu0 %v711, 111
        %v1063 = vpop.permute.xlu0 %1062
        %1064 = vrot.lane.b32.xlu0 %v712, 111
        %v1065 = vpop.permute.xlu0 %1064
        %v1066 = vsel %vm653, %v1063, %v1065
        %v1067 = vsel %vm653, %v1065, %v652
        %v1069 = vsel %vm717, %v1061, 0
        %v1072 = vsel %vm721, %v1066, 0
        %v1075 = vsel %vm721, %v1067, 0
        %1077 = vmatpush.bf16.msra.mxu0 0
        %1078 = vmatpush.bf16.msra.mxu0 0
        %1079 = vmatpush.bf16.msra.mxu0 0
        %1080 = vmatpush.bf16.msra.mxu0 0
        %1081 = vmatpush.bf16.msra.mxu0 0
        %1082 = vmatpush.bf16.msra.mxu0 0
        %1083 = vmatpush.bf16.msra.mxu0 0
        %1084 = vmatpush.bf16.msra.mxu0 %v1072
        %1085 = vmatmul.bf16.gmra.mxu0 %v1069
        %v1086 = vpop.f32.mrf.mxu0
        %v1087 = vadd.f32 0.0, %v1086
        %v1088 = vpop.f32.mrf.mxu0
        %1089 = vdwg.mxu0
        %1090 = vmatpush.bf16.msra.mxu0 0
        %1091 = vmatpush.bf16.msra.mxu0 0
        %1092 = vmatpush.bf16.msra.mxu0 0
        %1093 = vmatpush.bf16.msra.mxu0 0
        %1094 = vmatpush.bf16.msra.mxu0 0
        %1095 = vmatpush.bf16.msra.mxu0 0
        %1096 = vmatpush.bf16.msra.mxu0 0
        %1097 = vmatpush.bf16.msra.mxu0 %v1075
        %1098 = vmatmul.bf16.gmra.mxu0 %v1069
        %v1099 = vpop.f32.mrf.mxu0
        %v1100 = vadd.f32 0.0, %v1099
        %v1101 = vpop.f32.mrf.mxu0
        %1102 = vdwg.mxu0
        %v1103 = vadd.f32 %v1044, %v1087
        %v1104 = vadd.f32 %v1057, %v1100
        %v1105 = vmul.f32 %v1103, %v261
        %v1106 = vmul.f32 %v1104, %v262
        %v1107 = vadd.f32 %v972, %v1105
        %v1108 = vadd.f32 %v973, %v1106
        %v1109 = vld [vmem:[%s4] sm:$0xff]
        %1111 = vset.pattern.permute.xlu0 0
        %1112 = vperm.xlu0 %1111, %v1109
        %v1113 = vpop.permute.xlu0 %1112
        %v1115 = vadd.f32 %v1107, %v1113
        %v1116 = vadd.f32 %v1108, %v1113
        %v1117 = vmax.f32 %v1115, 0.0
        %v1118 = vmax.f32 %v1116, 0.0
        %1119 = vst [vmem:[%s217] sm:$0xff] %v1117
        %1120 = vst [vmem:[%s217 + $0x8] sm:$0xff] %v1118
        %s1121 = sand.u32 %s137, 1
        %s1122 = scalar_lea.sflag [#allocation3], %s1121
        %s1123 = sand.u32 %s137, 1
        %s1124 = smul.addr %s1123, 16
        %s1125 = scalar_lea.vmem [#allocation2], %s1124
        // Predicated region
        $region41: #{tpu_custom_call.1} parent=39 // pred_check
          %p1126 = pneg %p147
        $region42: #{tpu_custom_call.1} parent=39 // pred_check_branch
          %1128 = sbr.rel (%p1126) target = $region44
        $region43: #{tpu_custom_call.1} parent=39 // pred_region
          %1130 = vsyncadd %s1122, 0
          %s1131 = smul.addr %s19, 2
          %s1132 = smul.addr %s1131, 8
          %s1133 = scalar_lea.hbm %s5, %s1132
          %s1135 = sshll.u32 %s1125, 4
          %s1136 = int_to_ptr.vmem [resolvable:$true] %s1135
          %s1137 = sshll.u32 %s1133, 4
          %s1138 = int_to_ptr.hbm [resolvable:$true] %s1137
          %1140 = dma.vmem_to_hbm [thread:$0]  %s1136, 256, %s1138, %s1122
        $region44: #{tpu_custom_call.1} parent=39 // pred_fallthru
          _
      $region40: #{tpu_custom_call.1} parent=5 // pred_fallthru
        _
      %p1141 = scmp.le.s32.totalorder 2, %s14
      // Predicated region
      $region45: #{tpu_custom_call.1} parent=5 // pred_check
        %p1142 = pneg %p1141
      $region46: #{tpu_custom_call.1} parent=5 // pred_check_branch
        %1144 = sbr.rel (%p1142) target = $region48
      $region47: #{tpu_custom_call.1} parent=5 // pred_region
        %s1145 = ssub.s32 %s14, 2
        // Predicated region
        $region49: #{tpu_custom_call.1} parent=47 // pred_check
          %p1146 = pneg %p153
        $region50: #{tpu_custom_call.1} parent=47 // pred_check_branch
          %1148 = sbr.rel (%p1146) target = $region52
        $region51: #{tpu_custom_call.1} parent=47 // pred_region
          %s1149 = sand.u32 %s138, 1
          %s1150 = scalar_lea.sflag [#allocation3], %s1149
          %s1151 = sand.u32 %s138, 1
          %s1152 = smul.addr %s1151, 16
          %s1153 = scalar_lea.vmem [#allocation2], %s1152
          %1155 = dma.done %s1150, 256
        $region52: #{tpu_custom_call.1} parent=47 // pred_fallthru
          _
      $region48: #{tpu_custom_call.1} parent=5 // pred_fallthru
        _
    $region6: #{tpu_custom_call.1} parent=1 // loop_footer
      %s18 = sadd.s32 1, %s14
    $region7: #{tpu_custom_call.1} parent=1 // loop_footer_branch
      %13 = sbr.rel target = $region3
    $region8: #{tpu_custom_call.1} parent=1 // loop_exit
      _
    %1156 = vsyncpa [#allocation3], 1
    %s1157 = scalar_lea.sflag [#allocation3], 1
    %1158 = vsyncpa %s1157, 1

</llo_original>
